<compile_context>
chip_gen: v7x
topology: tpu7x:2x2x1
jax: 0.10.0
libtpu: 0.0.40
codegen_flags: <defaults>
</compile_context>

<pallas_src>
import functools

import jax
import jax.numpy as jnp
from jax.experimental import pallas as pl
from jax.experimental.pallas import tpu as pltpu

_LANES = 128
_SUBLANES = 8


def _round_up(n, m):
    return ((n + m - 1) // m) * m


def _sse_kernel(x_ref, t_ref, partial_ref, *, block_rows, valid_rows, needs_mask):
    """Per-block sum of squared differences reduced to an (8, 128) f32 partial.

    Pure VPU work: diff, square, (optional) row mask, and elementwise accumulation
    of (block_rows // 8) vregs into one (8, 128) partial.  The reshape splits the
    sublane-major dim on (8, 128) vreg boundaries, so no retiling copy is needed.
    """
    d = x_ref[...].astype(jnp.float32) - t_ref[...].astype(jnp.float32)
    sq = d * d
    if needs_mask:
        # Only needed when the row count is not a multiple of block_rows: the last
        # (partial) block's out-of-range rows hold stale VMEM data and must be zeroed.
        i = pl.program_id(0)
        row = jax.lax.broadcasted_iota(jnp.int32, sq.shape, 0) + i * block_rows
        sq = jnp.where(row < valid_rows, sq, 0.0)
    partial_ref[...] = jnp.sum(sq.reshape(-1, _SUBLANES, _LANES), axis=0)


def prepare_target(target):
    """One-time relayout of the (detached) target feature map.

    Splits the flattened target into a lane-aligned (rows, 128) main part plus a
    <128-element tail.  No padding: when target.size is a multiple of 128 this is a
    free reshape (no extra HBM copy).  Cache the result across optimization steps
    (the ContentLoss class below does) so the relayout is never repeated per step.
    """
    total = int(target.size)
    rows = total // _LANES
    tail = total % _LANES
    flat = target.reshape(-1)
    if tail:
        main2d = flat[: rows * _LANES].reshape(rows, _LANES) if rows else None
        tail1d = flat[rows * _LANES:]
    else:
        main2d = flat.reshape(rows, _LANES)
        tail1d = None
    return main2d, tail1d, total


def content_loss(x, target=None, *, prepared_target=None,
                 tile_rows=8192, min_kernel_elems=1 << 20):
    """ContentLoss.forward: returns (x, loss) with loss = mean((x - target)**2) in f32.

    `x` is returned unchanged (pass-through, no copy).  Pass either `target` (raw
    array) or `prepared_target` (output of prepare_target, reused across steps).
    """
    if prepared_target is None:
        assert target is not None, "need target or prepared_target"
        prepared_target = prepare_target(target)
    t_main, t_tail, t_total = prepared_target

    total = int(x.size)
    assert total == t_total, "input/target must have identical element counts"

    rows = total // _LANES
    tail = total % _LANES

    # Sublane-packing-safe row alignment for the narrower of the two dtypes
    # (f32 -> 8, bf16 -> 16, int8/fp8 -> 32).  Mixed dtypes are allowed; both are
    # upcast to f32 inside the kernel.
    t_dtype = t_main.dtype if t_main is not None else t_tail.dtype
    min_itemsize = min(jnp.dtype(x.dtype).itemsize, jnp.dtype(t_dtype).itemsize)
    row_align = _SUBLANES * max(1, 4 // int(min_itemsize))

    flat_x = x.reshape(-1)

    # ---- Small-input fast path: fused XLA reduction beats kernel launch overhead.
    if total < int(min_kernel_elems) or rows < row_align:
        sse = jnp.float32(0.0)
        if t_main is not None:
            d = (flat_x[: rows * _LANES].reshape(rows, _LANES).astype(jnp.float32)
                 - t_main.astype(jnp.float32))
            sse = sse + jnp.sum(d * d)
        if t_tail is not None:
            dt = flat_x[rows * _LANES:].astype(jnp.float32) - t_tail.astype(jnp.float32)
            sse = sse + jnp.sum(dt * dt)
        return x, sse / jnp.float32(total)

    # ---- Kernel path (no padding; only a <128-element tail is handled outside).
    if tail:
        x_main = flat_x[: rows * _LANES].reshape(rows, _LANES)
        x_tail = flat_x[rows * _LANES:]
    else:
        x_main = flat_x.reshape(rows, _LANES)
        x_tail = None

    # Block rows: multiple of row_align, never larger than the row count (round
    # DOWN), capped at tile_rows.  Default 8192 -> 4 MiB f32 / 2 MiB bf16 tiles;
    # 2 inputs x 2 pipeline buffers stays <= 16 MiB (safe on v5e/v6e/v7x).
    tile_rows_aligned = max(row_align, (int(tile_rows) // row_align) * row_align)
    block_rows = min(tile_rows_aligned, (rows // row_align) * row_align)
    num_blocks = pl.cdiv(rows, block_rows)
    needs_mask = (rows % block_rows) != 0

    kernel = functools.partial(
        _sse_kernel, block_rows=block_rows, valid_rows=rows, needs_mask=needs_mask)

    partials = pl.pallas_call(
        kernel,
        out_shape=jax.ShapeDtypeStruct((num_blocks * _SUBLANES, _LANES), jnp.float32),
        grid_spec=pltpu.PrefetchScalarGridSpec(
            num_scalar_prefetch=0,
            grid=(num_blocks,),
            in_specs=[
                pl.BlockSpec((block_rows, _LANES), lambda i: (i, 0)),
                pl.BlockSpec((block_rows, _LANES), lambda i: (i, 0)),
            ],
            out_specs=pl.BlockSpec((_SUBLANES, _LANES), lambda i: (i, 0)),
        ),
        compiler_params=pltpu.CompilerParams(
            # Independent per-block partials -> parallel (megacore-shardable on v7x).
            dimension_semantics=("parallel",),
            # 2 inputs x 2 buffers x <=4 MiB tiles + tiny output: well under this.
            vmem_limit_bytes=32 * 1024 * 1024,
        ),
    )(x_main, t_main)

    sse = jnp.sum(partials)
    if x_tail is not None:
        dt = x_tail.astype(jnp.float32) - t_tail.astype(jnp.float32)
        sse = sse + jnp.sum(dt * dt)
    # Pass-through: return the original input, no copy / no extra HBM traffic.
    return x, sse / jnp.float32(total)


class ContentLoss:
    """JAX/Pallas analogue of the PyTorch ContentLoss module.

    __call__(x) returns x unchanged and stores the scalar MSE vs the detached
    target in self.loss.  Target relayout is done once at construction.
    """
    # TODO(synk): self.loss is Python-side mutable state; inside jit use the
    # functional content_loss() and thread the loss value explicitly.

    def __init__(self, target, *, tile_rows=8192, min_kernel_elems=1 << 20):
        self._prepared = prepare_target(jax.lax.stop_gradient(target))
        self._tile_rows = tile_rows
        self._min_kernel_elems = min_kernel_elems
        self.loss = None

    def __call__(self, x):
        out, self.loss = content_loss(
            x, prepared_target=self._prepared,
            tile_rows=self._tile_rows, min_kernel_elems=self._min_kernel_elems)
        return out


if __name__ == "__main__":
    key = jax.random.PRNGKey(0)
    k1, k2, k3, k4, k5, k6, k7, k8 = jax.random.split(key, 8)

    # NCHW, matching the PyTorch conv-feature-map convention.
    B, C, H, W = 2, 4, 16, 16
    x = jax.random.normal(k1, (B, C, H, W), dtype=jnp.float32)
    target = jax.random.normal(k2, (B, C, H, W), dtype=jnp.float32)
    ref_loss = jnp.mean((x - target) ** 2)

    # 1) Force the Pallas kernel path even at this small demo size.
    out, loss = content_loss(x, target, min_kernel_elems=0)
    out = jax.block_until_ready(out)
    loss = jax.block_until_ready(loss)
    assert out.shape == x.shape and jnp.allclose(out, x), "pass-through mismatch"
    assert jnp.allclose(loss, ref_loss, rtol=1e-5, atol=1e-6), (loss, ref_loss)

    # 2) Module-style usage (cached prepared target); small input -> fast path.
    cl = ContentLoss(target)
    out2 = jax.block_until_ready(cl(x))
    assert jnp.allclose(out2, x)
    assert jnp.allclose(jax.block_until_ready(cl.loss), ref_loss, rtol=1e-5, atol=1e-6)

    # 3) Element count NOT a multiple of 128: exercises in-kernel row masking
    #    (2 blocks, partial last block) + the tiny tail epilogue.  No padding copies.
    x_odd = jax.random.normal(k3, (2, 3, 15, 17), dtype=jnp.float32)
    t_odd = jax.random.normal(k4, (2, 3, 15, 17), dtype=jnp.float32)
    _, loss_odd = content_loss(x_odd, t_odd, min_kernel_elems=0)
    loss_odd = jax.block_until_ready(loss_odd)
    ref_odd = jnp.mean((x_odd - t_odd) ** 2)
    assert jnp.allclose(loss_odd, ref_odd, rtol=1e-5, atol=1e-6), (loss_odd, ref_odd)

    # 4) bf16 inputs stay bf16 into the kernel (f32 upcast happens in-kernel).
    x_bf = jax.random.normal(k5, (2, 8, 16, 16), dtype=jnp.bfloat16)
    t_bf = jax.random.normal(k6, (2, 8, 16, 16), dtype=jnp.bfloat16)
    _, loss_bf = content_loss(x_bf, t_bf, min_kernel_elems=0)
    loss_bf = jax.block_until_ready(loss_bf)
    ref_bf = jnp.mean((x_bf.astype(jnp.float32) - t_bf.astype(jnp.float32)) ** 2)
    assert jnp.allclose(loss_bf, ref_bf, rtol=1e-5, atol=1e-6), (loss_bf, ref_bf)

    # 5) Multi-block grid with a masked partial last block (small tile_rows).
    x_mb = jax.random.normal(k7, (4, 8, 32, 32), dtype=jnp.float32)
    t_mb = jax.random.normal(k8, (4, 8, 32, 32), dtype=jnp.float32)
    _, loss_mb = content_loss(x_mb, t_mb, min_kernel_elems=0, tile_rows=96)
    loss_mb = jax.block_until_ready(loss_mb)
    ref_mb = jnp.mean((x_mb - t_mb) ** 2)
    assert jnp.allclose(loss_mb, ref_mb, rtol=1e-5, atol=1e-6), (loss_mb, ref_mb)

    print("KERNEL_OK")
</pallas_src>

<mosaic_0001>
module attributes {stable_mosaic.version = 11 : i64} {
  func.func @_sse_kernel(%arg0: i32, %arg1: memref<16x128xf32, #tpu.memory_space<vmem>>, %arg2: memref<16x128xf32, #tpu.memory_space<vmem>>, %arg3: memref<8x128xf32, #tpu.memory_space<vmem>>) attributes {dimension_semantics = [#tpu.dimension_semantics<parallel>], iteration_bounds = array<i64: 1>, scalar_prefetch = 0 : i64, scratch_operands = 0 : i64, tpu.core_type = #tpu.core_type<tc>, window_params = [{transform_indices = @transform_0, window_bounds = array<i64: 16, 128>}, {transform_indices = @transform_1, window_bounds = array<i64: 16, 128>}, {transform_indices = @transform_2, window_bounds = array<i64: 8, 128>}]} {
    %c0 = arith.constant 0 : index
    %c0_0 = arith.constant 0 : index
    %0 = vector.load %arg1[%c0, %c0_0] : memref<16x128xf32, #tpu.memory_space<vmem>>, vector<16x128xf32>
    %c0_1 = arith.constant 0 : index
    %c0_2 = arith.constant 0 : index
    %1 = vector.load %arg2[%c0_1, %c0_2] : memref<16x128xf32, #tpu.memory_space<vmem>>, vector<16x128xf32>
    %2 = arith.subf %0, %1 : vector<16x128xf32>
    %3 = arith.mulf %2, %2 : vector<16x128xf32>
    %4 = vector.shape_cast %3 : vector<16x128xf32> to vector<2x8x128xf32>
    %cst = arith.constant dense<0.000000e+00> : vector<8x128xf32>
    %5 = vector.multi_reduction <add>, %4, %cst [0] : vector<2x8x128xf32> to vector<8x128xf32>
    %c0_3 = arith.constant 0 : index
    %c0_4 = arith.constant 0 : index
    %6 = vector.load %arg3[%c0_3, %c0_4] : memref<8x128xf32, #tpu.memory_space<vmem>>, vector<8x128xf32>
    tpu.vector_store %arg3[%c0_3, %c0_4], %5 {strides = array<i32>} : memref<8x128xf32, #tpu.memory_space<vmem>>, vector<8x128xf32>,
    return
  }
  func.func @transform_0(%arg0: i32) -> (i32, i32) {
    %c0_i32 = arith.constant 0 : i32
    %c0_i32_0 = arith.constant 0 : i32
    return %arg0, %c0_i32 : i32, i32
  }
  func.func @transform_1(%arg0: i32) -> (i32, i32) {
    %c0_i32 = arith.constant 0 : i32
    %c0_i32_0 = arith.constant 0 : i32
    return %arg0, %c0_i32 : i32, i32
  }
  func.func @transform_2(%arg0: i32) -> (i32, i32) {
    %c0_i32 = arith.constant 0 : i32
    %c0_i32_0 = arith.constant 0 : i32
    return %arg0, %c0_i32 : i32, i32
  }
}

</mosaic_0001>

<llo_original>
// kernel: tpu_custom_call.1
$region0: #{tpu_custom_call.1}
  #allocation0 [shape = 'u32[]', space=smem, size = 0x4, offset = 0x4, fixed_abs, tag = 'smem constant byte address 0x4 - core index']
  #allocation1 [shape = 'u32[144,128]{1,0:T(1,128)}', space=vmem, size = 0x12000, scoped, tag = 'internal scratch']
  %s0 = inlined_call_operand.hbm [shape: f32[16,128], index: 0, kind: input, shape index: {}]
  %s1 = inlined_call_operand.hbm [shape: f32[16,128], index: 1, kind: input, shape index: {}]
  %s2 = inlined_call_operand.hbm [shape: f32[8,128], index: 2, kind: output, shape index: {}]
  %s3 = sld [smem:[#allocation0]]
  $region26: #{tpu_custom_call.1} parent=0
    _
  %s5 = ssub.s32 1, %s3
  %s6 = scalar_select 0, %s5, %s3
  $region1: #{tpu_custom_call.1} parent=0
    #allocation2 [shape = 'u8[8192]{0}', space=vmem, size = 0x2000, scoped, tag = 'input window, operand 0, single buffered']
    #allocation3 [shape = 's32[1]{0}', space=sflag, size = 0x4, scoped, tag = 'scoped memory for tpu_custom_call.1']
    #allocation4 [shape = 's32[1]{0}', space=sflag, size = 0x4, scoped, tag = 'scoped memory for tpu_custom_call.1']
    #allocation5 [shape = 'u8[8192]{0}', space=vmem, size = 0x2000, scoped, tag = 'input window, operand 1, single buffered']
    #allocation6 [shape = 's32[1]{0}', space=sflag, size = 0x4, scoped, tag = 'scoped memory for tpu_custom_call.1']
    #allocation7 [shape = 'u8[4096]{0}', space=vmem, size = 0x1000, scoped, tag = 'output window, operand 0, single buffered']
    %7 = vsyncpa [#allocation3], 0
    %8 = vsyncpa [#allocation6], 0
    %9 = vsyncpa [#allocation4], 0
    // Predicated region
    $region2: #{tpu_custom_call.1} parent=1 // pred_check
      _
    $region3: #{tpu_custom_call.1} parent=1 // pred_check_branch
      %11 = sbr.rel (0) target = $region5
    $region4: #{tpu_custom_call.1} parent=1 // pred_region
      %s13 = ssub.s32 256, 256
      %14 = vsyncadd [#allocation3], %s13
      %s15 = sshll.u32 [#allocation2], 4
      %s16 = int_to_ptr.vmem [resolvable:$true] %s15
      %21 = dma.hbm_to_vmem [thread:$0]  %s0, 256, %s16, [#allocation3], 128, 128, 8
    $region5: #{tpu_custom_call.1} parent=1 // pred_fallthru
      _
    // Predicated region
    $region6: #{tpu_custom_call.1} parent=1 // pred_check
      _
    $region7: #{tpu_custom_call.1} parent=1 // pred_check_branch
      %23 = sbr.rel (0) target = $region9
    $region8: #{tpu_custom_call.1} parent=1 // pred_region
      %s25 = ssub.s32 256, 256
      %26 = vsyncadd [#allocation6], %s25
      %s27 = sshll.u32 [#allocation5], 4
      %s28 = int_to_ptr.vmem [resolvable:$true] %s27
      %33 = dma.hbm_to_vmem [thread:$0]  %s1, 256, %s28, [#allocation6], 128, 128, 8
    $region9: #{tpu_custom_call.1} parent=1 // pred_fallthru
      _
    // Predicated region
    $region10: #{tpu_custom_call.1} parent=1 // pred_check
      _
    $region11: #{tpu_custom_call.1} parent=1 // pred_check_branch
      %35 = sbr.rel (0) target = $region13
    $region12: #{tpu_custom_call.1} parent=1 // pred_region
      %36 = dma.done [#allocation3], 256
    $region13: #{tpu_custom_call.1} parent=1 // pred_fallthru
      _
    // Predicated region
    $region14: #{tpu_custom_call.1} parent=1 // pred_check
      _
    $region15: #{tpu_custom_call.1} parent=1 // pred_check_branch
      %38 = sbr.rel (0) target = $region17
    $region16: #{tpu_custom_call.1} parent=1 // pred_region
      %39 = dma.done [#allocation6], 256
    $region17: #{tpu_custom_call.1} parent=1 // pred_fallthru
      _
    %v40 = vld [vmem:[#allocation2] sm:$0xff]
    %v41 = vld [vmem:[#allocation2 + $0x8] sm:$0xff]
    %v42 = vld [vmem:[#allocation5] sm:$0xff]
    %v43 = vld [vmem:[#allocation5 + $0x8] sm:$0xff]
    %v44 = vsub.f32 %v40, %v42
    %v45 = vsub.f32 %v41, %v43
    %v46 = vmul.f32 %v44, %v44
    %v47 = vmul.f32 %v45, %v45
    %v48 = vadd.f32 %v46, %v47
    %49 = vst [vmem:[#allocation7] sm:$0xff] %v48
    // Predicated region
    $region18: #{tpu_custom_call.1} parent=1 // pred_check
      _
    $region19: #{tpu_custom_call.1} parent=1 // pred_check_branch
      %51 = sbr.rel (0) target = $region21
    $region20: #{tpu_custom_call.1} parent=1 // pred_region
      %s53 = ssub.s32 128, 128
      %54 = vsyncadd [#allocation4], %s53
      %s56 = sshll.u32 [#allocation7], 4
      %s57 = int_to_ptr.vmem [resolvable:$true] %s56
      %59 = dma.vmem_to_hbm [thread:$0]  %s57, 128, %s2, [#allocation4]
    $region21: #{tpu_custom_call.1} parent=1 // pred_fallthru
      _
    // Predicated region
    $region22: #{tpu_custom_call.1} parent=1 // pred_check
      _
    $region23: #{tpu_custom_call.1} parent=1 // pred_check_branch
      %61 = sbr.rel (0) target = $region25
    $region24: #{tpu_custom_call.1} parent=1 // pred_region
      %62 = dma.done [#allocation4], 128
    $region25: #{tpu_custom_call.1} parent=1 // pred_fallthru
      _
    %63 = vsyncpa [#allocation3], 1
    %64 = vsyncpa [#allocation6], 1
    %65 = vsyncpa [#allocation4], 1

</llo_original>
